<compile_context>
chip_gen: v5e
topology: v5e:2x2
jax: 0.10.0
libtpu: 0.0.40
codegen_flags: <defaults>
</compile_context>

<pallas_src>
import jax
import jax.numpy as jnp
from jax import lax
from jax.experimental import pallas as pl
from jax.experimental.pallas import tpu as pltpu


def _theta_kernel(x_ref, w_ref, b_ref, o_ref):
    # x_ref: (TB, D) activation tile, w_ref: (D, D) full weight [out, in],
    # b_ref: (1, D) bias row.
    x = x_ref[...]
    w = w_ref[...]
    b = b_ref[...]
    # x @ W.T via dot_general contracting dim 1 of both operands -> MXU,
    # no transposed copy of W is materialized.
    acc = lax.dot_general(
        x, w,
        dimension_numbers=(((1,), (1,)), ((), ())),
        preferred_element_type=jnp.float32,
    )
    # Bias add in f32, single cast at the final store.
    o_ref[...] = (acc + b).astype(o_ref.dtype)


def _round_up(x: int, m: int) -> int:
    return (x + m - 1) // m * m


def theta_forward(features: jax.Array, weight: jax.Array, bias: jax.Array,
                  *, max_block_b: int = 512) -> jax.Array:
    """features: (B, D), weight: (D, D) [out_features, in_features], bias: (D,)."""
    B, D = features.shape
    out_dtype = features.dtype

    # Pad feature dim to the 128-lane width and batch to an 8-row multiple so
    # stores are lane-dense / unmasked.  Zero padding keeps the valid block of
    # the result identical to the unpadded computation.
    D_pad = _round_up(max(D, 128), 128)
    TB = min(max_block_b, _round_up(B, 8))
    B_pad = _round_up(B, TB)

    x = features
    w = weight
    b = bias
    if (B_pad != B) or (D_pad != D):
        x = jnp.pad(features, ((0, B_pad - B), (0, D_pad - D)))
        w = jnp.pad(weight, ((0, D_pad - D), (0, D_pad - D)))
        b = jnp.pad(bias, ((0, D_pad - D),))
    b2d = b.reshape(1, D_pad)

    grid = (pl.cdiv(B_pad, TB),)
    out = pl.pallas_call(
        _theta_kernel,
        out_shape=jax.ShapeDtypeStruct((B_pad, D_pad), out_dtype),
        grid=grid,
        in_specs=[
            pl.BlockSpec((TB, D_pad), lambda i: (i, 0)),      # activation tile
            pl.BlockSpec((D_pad, D_pad), lambda i: (0, 0)),   # resident weight
            pl.BlockSpec((1, D_pad), lambda i: (0, 0)),       # bias row
        ],
        out_specs=pl.BlockSpec((TB, D_pad), lambda i: (i, 0)),
        compiler_params=pltpu.CompilerParams(
            dimension_semantics=("parallel",),   # batch rows are independent
            vmem_limit_bytes=64 * 1024 * 1024,
        ),
    )(x, w, b2d)

    if (B_pad != B) or (D_pad != D):
        out = out[:B, :D]
    return out


if __name__ == "__main__":
    # Small shapes consistent with the module: batch=8, dim=32.
    B, D = 8, 32
    key = jax.random.PRNGKey(0)
    features = jax.random.normal(key, (B, D), dtype=jnp.float32)

    # Deterministic parameter init matching Theta.__init__:
    #   nn.init.eye_(layer1.weight), nn.init.zeros_(layer1.bias)
    weight = jnp.eye(D, dtype=jnp.float32)
    bias = jnp.zeros((D,), dtype=jnp.float32)

    out = theta_forward(features, weight, bias)
    out = jax.block_until_ready(out)

    # Reference: Linear with eye weight and zero bias -> identity on features.
    ref = features @ weight.T + bias
    assert out.shape == (B, D)
    assert jnp.allclose(out, ref, atol=1e-5), "mismatch vs reference linear"

    # Also sanity-check a non-trivial weight/bias to exercise the real matmul path.
    key_w, key_b = jax.random.split(jax.random.PRNGKey(1))
    weight2 = jax.random.normal(key_w, (D, D), dtype=jnp.float32)
    bias2 = jax.random.normal(key_b, (D,), dtype=jnp.float32)
    out2 = jax.block_until_ready(theta_forward(features, weight2, bias2))
    ref2 = features @ weight2.T + bias2
    assert jnp.allclose(out2, ref2, atol=1e-4, rtol=1e-4), "mismatch vs reference linear (random W/b)"

    print("KERNEL_OK")
</pallas_src>

<mosaic_0001>
module attributes {stable_mosaic.version = 11 : i64} {
  func.func @_theta_kernel(%arg0: i32, %arg1: memref<8x128xf32, #tpu.memory_space<vmem>>, %arg2: memref<128x128xf32, #tpu.memory_space<vmem>>, %arg3: memref<1x128xf32, #tpu.memory_space<vmem>>, %arg4: memref<8x128xf32, #tpu.memory_space<vmem>>) attributes {dimension_semantics = [#tpu.dimension_semantics<parallel>], iteration_bounds = array<i64: 1>, scalar_prefetch = 0 : i64, scratch_operands = 0 : i64, tpu.core_type = #tpu.core_type<tc>, window_params = [{transform_indices = @transform_0, window_bounds = array<i64: 8, 128>}, {pipeline_mode = #tpu.pipeline_mode<synchronous>, transform_indices = @transform_1, window_bounds = array<i64: 128, 128>}, {pipeline_mode = #tpu.pipeline_mode<synchronous>, transform_indices = @transform_2, window_bounds = array<i64: 1, 128>}, {transform_indices = @transform_3, window_bounds = array<i64: 8, 128>}]} {
    %c0 = arith.constant 0 : index
    %c0_0 = arith.constant 0 : index
    %0 = vector.load %arg1[%c0, %c0_0] : memref<8x128xf32, #tpu.memory_space<vmem>>, vector<8x128xf32>
    %c0_1 = arith.constant 0 : index
    %c0_2 = arith.constant 0 : index
    %1 = vector.load %arg2[%c0_1, %c0_2] : memref<128x128xf32, #tpu.memory_space<vmem>>, vector<128x128xf32>
    %c0_3 = arith.constant 0 : index
    %c0_4 = arith.constant 0 : index
    %2 = vector.load %arg3[%c0_3, %c0_4] : memref<1x128xf32, #tpu.memory_space<vmem>>, vector<1x128xf32>
    %cst = arith.constant dense<0.000000e+00> : vector<8x128xf32>
    %3 = tpu.matmul %0, %1, %cst {dimension_numbers = #tpu.dot_dimension_numbers<[1], [1], [0], [0], [0, 0, 1, 0], [], []>} : vector<8x128xf32>, vector<128x128xf32>, vector<8x128xf32> -> vector<8x128xf32>
    %4 = vector.broadcast %2 : vector<1x128xf32> to vector<8x128xf32>
    %5 = arith.addf %3, %4 : vector<8x128xf32>
    %c0_5 = arith.constant 0 : index
    %c0_6 = arith.constant 0 : index
    %6 = vector.load %arg4[%c0_5, %c0_6] : memref<8x128xf32, #tpu.memory_space<vmem>>, vector<8x128xf32>
    tpu.vector_store %arg4[%c0_5, %c0_6], %5 {strides = array<i32>} : memref<8x128xf32, #tpu.memory_space<vmem>>, vector<8x128xf32>,
    return
  }
  func.func @transform_0(%arg0: i32) -> (i32, i32) {
    %c0_i32 = arith.constant 0 : i32
    %c0_i32_0 = arith.constant 0 : i32
    return %arg0, %c0_i32 : i32, i32
  }
  func.func @transform_1(%arg0: i32) -> (i32, i32) {
    %c0_i32 = arith.constant 0 : i32
    %c0_i32_0 = arith.constant 0 : i32
    %c0_i32_1 = arith.constant 0 : i32
    return %c0_i32, %c0_i32_0 : i32, i32
  }
  func.func @transform_2(%arg0: i32) -> (i32, i32) {
    %c0_i32 = arith.constant 0 : i32
    %c0_i32_0 = arith.constant 0 : i32
    %c0_i32_1 = arith.constant 0 : i32
    return %c0_i32, %c0_i32_0 : i32, i32
  }
  func.func @transform_3(%arg0: i32) -> (i32, i32) {
    %c0_i32 = arith.constant 0 : i32
    %c0_i32_0 = arith.constant 0 : i32
    return %arg0, %c0_i32 : i32, i32
  }
}

</mosaic_0001>

<llo_original>
// kernel: tpu_custom_call.1
$region0: #{tpu_custom_call.1}
  #allocation0 [shape = 'u32[]', space=smem, size = 0x4, offset = 0x4, fixed_abs, tag = 'smem constant byte address 0x4 - core index']
  #allocation1 [shape = 'u32[72,128]{1,0:T(1,128)}', space=vmem, size = 0x9000, scoped, tag = 'internal scratch']
  %s0 = inlined_call_operand.hbm [shape: f32[8,128], index: 0, kind: input, shape index: {}]
  %s1 = inlined_call_operand.hbm [shape: f32[128,128], index: 1, kind: input, shape index: {}]
  %s2 = inlined_call_operand.vmem [shape: f32[1,128], index: 2, kind: input, shape index: {}]
  %s3 = inlined_call_operand.hbm [shape: f32[8,128], index: 3, kind: output, shape index: {}]
  %s4 = sld [smem:[#allocation0]]
  $region30: #{tpu_custom_call.1} parent=0
    _
  %s6 = ssub.s32 1, %s4
  %s7 = scalar_select 0, %s6, %s4
  $region1: #{tpu_custom_call.1} parent=0
    #allocation2 [shape = 'u8[4096]{0}', space=vmem, size = 0x1000, scoped, tag = 'input window, operand 0, single buffered']
    #allocation3 [shape = 's32[1]{0}', space=sflag, size = 0x4, scoped, tag = 'scoped memory for tpu_custom_call.1']
    #allocation4 [shape = 's32[1]{0}', space=sflag, size = 0x4, scoped, tag = 'scoped memory for tpu_custom_call.1']
    #allocation5 [shape = 'u8[65536]{0}', space=vmem, size = 0x10000, scoped, tag = 'input window, operand 1, single buffered']
    #allocation6 [shape = 's32[1]{0}', space=sflag, size = 0x4, scoped, tag = 'scoped memory for tpu_custom_call.1']
    #allocation7 [shape = 'u8[4096]{0}', space=vmem, size = 0x1000, scoped, tag = 'output window, operand 0, single buffered']
    %8 = vsyncpa [#allocation3], 0
    %9 = vsyncpa [#allocation6], 0
    %10 = vsyncpa [#allocation4], 0
    // Predicated region
    $region2: #{tpu_custom_call.1} parent=1 // pred_check
      _
    $region3: #{tpu_custom_call.1} parent=1 // pred_check_branch
      %12 = sbr.rel (0) target = $region5
    $region4: #{tpu_custom_call.1} parent=1 // pred_region
      %14 = vsyncadd [#allocation3], 0
      %s16 = sshll.u32 %s0, 4
      %s17 = int_to_ptr.hbm [resolvable:$true] %s16
      %s18 = sshll.u32 [#allocation2], 4
      %s19 = int_to_ptr.vmem [resolvable:$true] %s18
      %21 = dma.hbm_to_vmem [thread:$0]  %s17, 128, %s19, [#allocation3]
    $region5: #{tpu_custom_call.1} parent=1 // pred_fallthru
      _
    // Predicated region
    $region6: #{tpu_custom_call.1} parent=1 // pred_check
      _
    $region7: #{tpu_custom_call.1} parent=1 // pred_check_branch
      %23 = sbr.rel (0) target = $region9
    $region8: #{tpu_custom_call.1} parent=1 // pred_region
      %25 = vsyncadd [#allocation6], 0
      %s26 = sshll.u32 %s1, 4
      %s27 = int_to_ptr.hbm [resolvable:$true] %s26
      %s28 = sshll.u32 [#allocation5], 4
      %s29 = int_to_ptr.vmem [resolvable:$true] %s28
      %34 = dma.hbm_to_vmem [thread:$0]  %s27, 2048, %s29, [#allocation6], 128, 128, 8
    $region9: #{tpu_custom_call.1} parent=1 // pred_fallthru
      _
    // Predicated region
    $region10: #{tpu_custom_call.1} parent=1 // pred_check
      _
    $region11: #{tpu_custom_call.1} parent=1 // pred_check_branch
      %36 = sbr.rel (0) target = $region13
    $region12: #{tpu_custom_call.1} parent=1 // pred_region
      _
    $region13: #{tpu_custom_call.1} parent=1 // pred_fallthru
      _
    // Predicated region
    $region14: #{tpu_custom_call.1} parent=1 // pred_check
      _
    $region15: #{tpu_custom_call.1} parent=1 // pred_check_branch
      %38 = sbr.rel (0) target = $region17
    $region16: #{tpu_custom_call.1} parent=1 // pred_region
      %40 = dma.done [#allocation3], 128
    $region17: #{tpu_custom_call.1} parent=1 // pred_fallthru
      _
    // Predicated region
    $region18: #{tpu_custom_call.1} parent=1 // pred_check
      _
    $region19: #{tpu_custom_call.1} parent=1 // pred_check_branch
      %42 = sbr.rel (0) target = $region21
    $region20: #{tpu_custom_call.1} parent=1 // pred_region
      %44 = dma.done [#allocation6], 2048
    $region21: #{tpu_custom_call.1} parent=1 // pred_fallthru
      _
    %v45 = vld [vmem:[#allocation2] sm:$0xff]
    %v46 = vld [vmem:[#allocation5] sm:$0xff]
    %v47 = vld [vmem:[#allocation5 + $0x8] sm:$0xff]
    %v48 = vld [vmem:[#allocation5 + $0x10] sm:$0xff]
    %v49 = vld [vmem:[#allocation5 + $0x18] sm:$0xff]
    %v50 = vld [vmem:[#allocation5 + $0x20] sm:$0xff]
    %v51 = vld [vmem:[#allocation5 + $0x28] sm:$0xff]
    %v52 = vld [vmem:[#allocation5 + $0x30] sm:$0xff]
    %v53 = vld [vmem:[#allocation5 + $0x38] sm:$0xff]
    %v54 = vld [vmem:[#allocation5 + $0x40] sm:$0xff]
    %v55 = vld [vmem:[#allocation5 + $0x48] sm:$0xff]
    %v56 = vld [vmem:[#allocation5 + $0x50] sm:$0xff]
    %v57 = vld [vmem:[#allocation5 + $0x58] sm:$0xff]
    %v58 = vld [vmem:[#allocation5 + $0x60] sm:$0xff]
    %v59 = vld [vmem:[#allocation5 + $0x68] sm:$0xff]
    %v60 = vld [vmem:[#allocation5 + $0x70] sm:$0xff]
    %v61 = vld [vmem:[#allocation5 + $0x78] sm:$0xff]
    %v62 = vld [vmem:[%s2] sm:$0x1]
    %v64 = vperm.slane %v62, 0
    %66 = vmatpush.xpose.msra.mxu0 %v61
    %67 = vmatpush.xpose.msra.mxu0 %v60
    %68 = vmatpush.xpose.msra.mxu0 %v59
    %69 = vmatpush.xpose.msra.mxu0 %v58
    %70 = vmatpush.xpose.msra.mxu0 %v57
    %71 = vmatpush.xpose.msra.mxu0 %v56
    %72 = vmatpush.xpose.msra.mxu0 %v55
    %73 = vmatpush.xpose.msra.mxu0 %v54
    %74 = vmatpush.xpose.msra.mxu0 %v53
    %75 = vmatpush.xpose.msra.mxu0 %v52
    %76 = vmatpush.xpose.msra.mxu0 %v51
    %77 = vmatpush.xpose.msra.mxu0 %v50
    %78 = vmatpush.xpose.msra.mxu0 %v49
    %79 = vmatpush.xpose.msra.mxu0 %v48
    %80 = vmatpush.xpose.msra.mxu0 %v47
    %81 = vmatpush.xpose.msra.mxu0 %v46
    %82 = vmatmul.f32.gmra.mxu0 %v45
    %v83 = vpop.f32.mrf.mxu0
    %v84 = vadd.f32 %v64, %v83
    %85 = vdwg.mxu0
    %86 = vst [vmem:[#allocation7] sm:$0xff] %v84
    // Predicated region
    $region22: #{tpu_custom_call.1} parent=1 // pred_check
      _
    $region23: #{tpu_custom_call.1} parent=1 // pred_check_branch
      %88 = sbr.rel (0) target = $region25
    $region24: #{tpu_custom_call.1} parent=1 // pred_region
      %90 = vsyncadd [#allocation4], 0
      %s92 = sshll.u32 [#allocation7], 4
      %s93 = int_to_ptr.vmem [resolvable:$true] %s92
      %s94 = sshll.u32 %s3, 4
      %s95 = int_to_ptr.hbm [resolvable:$true] %s94
      %97 = dma.vmem_to_hbm [thread:$0]  %s93, 128, %s95, [#allocation4]
    $region25: #{tpu_custom_call.1} parent=1 // pred_fallthru
      _
    // Predicated region
    $region26: #{tpu_custom_call.1} parent=1 // pred_check
      _
    $region27: #{tpu_custom_call.1} parent=1 // pred_check_branch
      %99 = sbr.rel (0) target = $region29
    $region28: #{tpu_custom_call.1} parent=1 // pred_region
      %101 = dma.done [#allocation4], 128
    $region29: #{tpu_custom_call.1} parent=1 // pred_fallthru
      _
    %102 = vsyncpa [#allocation3], 1
    %103 = vsyncpa [#allocation6], 1
    %104 = vsyncpa [#allocation4], 1

</llo_original>
